<compile_context>
chip_gen: v7x
topology: tpu7x:2x2x1
jax: 0.10.0
libtpu: 0.0.40
codegen_flags: <defaults>
</compile_context>

<pallas_src>
import functools

import jax
import jax.numpy as jnp
from jax.experimental import pallas as pl
from jax.experimental.pallas import tpu as pltpu


# ----------------------------- Pallas kernel --------------------------------
def scaler_kernel(x_ref, xmin_ref, scale_ref, o_ref):
    # (TB, D) tile; (1, D) params broadcast over the sublane (row) axis.
    x = x_ref[...].astype(jnp.float32)
    o_ref[...] = ((x - xmin_ref[...]) / scale_ref[...]).astype(o_ref.dtype)


# ------------------------------ wrapper --------------------------------------
def _batch_axis_semantics():
    """CORE_PARALLEL only on dual-TensorCore chips (v7x); 'parallel' elsewhere."""
    try:
        kind = jax.devices()[0].device_kind.lower()
    except Exception:  # pragma: no cover - be conservative
        kind = ""
    if "v7" in kind or "tpu7" in kind:
        return (pltpu.CORE_PARALLEL,)
    return ("parallel",)


@functools.partial(jax.jit, static_argnames=("block_rows",))
def scaler_forward(x_in, x_min, scale, *, block_rows=4096):
    """Scaler.forward(x_in) = (x_in - x_min) / scale, as a tiled Pallas kernel."""
    orig_shape = x_in.shape
    D = orig_shape[-1]

    # PyTorch-style type promotion: bf16 x with f32 buffers -> f32 out, etc.
    out_dtype = jnp.result_type(x_in.dtype, x_min.dtype, scale.dtype)

    # Flatten leading dims so the feature dim is the lane axis. Keep native
    # dtype for the streamed tensor (no extra HBM convert pass).
    x2 = x_in.reshape(-1, D)
    N = x2.shape[0]

    # Tiny per-feature params: prepare once in f32 (VMEM-resident in kernel).
    xmin2 = jnp.broadcast_to(x_min, (D,)).reshape(1, D).astype(jnp.float32)
    scale2 = jnp.broadcast_to(scale, (D,)).reshape(1, D).astype(jnp.float32)

    in_bytes = jnp.dtype(x2.dtype).itemsize
    out_bytes = jnp.dtype(out_dtype).itemsize

    # Sublane packing: 8 rows for 32-bit, 16 for 16-bit, 32 for 8-bit dtypes.
    sub = max(8 * max(1, 4 // in_bytes), 8 * max(1, 4 // out_bytes))

    # Batch tile: big enough to amortize per-step overhead, multiple of `sub`,
    # never larger than needed to cover N (rounded up to a legal block).
    n_rounded = pl.cdiv(N, sub) * sub
    tb = min(int(block_rows), n_rounded)
    tb = max(sub, (tb // sub) * sub)
    grid = (pl.cdiv(N, tb),)

    # VMEM: double-buffered in + out tiles + resident params, 2x headroom,
    # capped at 48 MiB so it stays safe on v7x (64 MiB physical per TC).
    buf_bytes = 2 * tb * D * (in_bytes + out_bytes) + 2 * D * 4
    vmem_limit = int(min(48 << 20, max(16 << 20, 2 * buf_bytes)))

    cost = pl.CostEstimate(
        flops=2 * N * D,
        transcendentals=0,
        bytes_accessed=N * D * (in_bytes + out_bytes) + 2 * D * 4,
    )

    out = pl.pallas_call(
        scaler_kernel,
        out_shape=jax.ShapeDtypeStruct((N, D), out_dtype),
        grid_spec=pltpu.PrefetchScalarGridSpec(
            num_scalar_prefetch=0,
            grid=grid,
            in_specs=[
                pl.BlockSpec((tb, D), lambda i: (i, 0)),   # x tile, streamed
                pl.BlockSpec((1, D), lambda i: (0, 0)),    # x_min, VMEM-resident
                pl.BlockSpec((1, D), lambda i: (0, 0)),    # scale, VMEM-resident
            ],
            out_specs=pl.BlockSpec((tb, D), lambda i: (i, 0)),
        ),
        compiler_params=pltpu.CompilerParams(
            dimension_semantics=_batch_axis_semantics(),
            vmem_limit_bytes=vmem_limit,
        ),
        cost_estimate=cost,
    )(x2, xmin2, scale2)

    return out.reshape(orig_shape[:-1] + (D,))


def reference_forward(x_in, x_min, scale):
    """Plain-JAX reference of Scaler.forward for verification."""
    return (x_in - x_min) / scale


# TODO(synk): Scaler.recover (x_min + scale * x) is the trivial elementwise
# inverse; forward only is implemented here.


# -------------------------------- main ---------------------------------------
if __name__ == "__main__":
    key = jax.random.PRNGKey(0)
    k1, k2, k3 = jax.random.split(key, 3)

    # Small, lane-dense shapes: flattened rows = 256, features = 128 lanes.
    B, S, D = 8, 32, 128
    x_in = jax.random.normal(k1, (B, S, D), jnp.float32)
    x_min = jax.random.normal(k2, (D,), jnp.float32)
    x_max = x_min + 0.5 + jax.random.uniform(k3, (D,), jnp.float32)  # scale > 0
    scale = x_max - x_min

    # block_rows=128 -> grid=(2,): exercises the pipelined, evenly-divided path.
    x_out = scaler_forward(x_in, x_min, scale, block_rows=128)
    jax.block_until_ready(x_out)

    x_ref = reference_forward(x_in, x_min, scale)
    assert x_out.shape == x_in.shape
    assert x_out.dtype == x_ref.dtype
    assert jnp.allclose(x_out, x_ref, atol=1e-5, rtol=1e-5), float(
        jnp.max(jnp.abs(x_out - x_ref)))

    # Partial last block (N=51 rows not divisible by the tile) + bf16 streaming
    # path: no wrapper pad/cast, boundary masking handles the remainder.
    x_bf = jax.random.normal(k1, (3, 17, D), jnp.float32).astype(jnp.bfloat16)
    y = scaler_forward(x_bf, x_min, scale, block_rows=128)
    jax.block_until_ready(y)
    y_ref = reference_forward(x_bf, x_min, scale)   # promotes bf16 -> f32
    assert y.shape == x_bf.shape
    assert y.dtype == y_ref.dtype
    assert jnp.allclose(y, y_ref, atol=1e-5, rtol=1e-5), float(
        jnp.max(jnp.abs(y.astype(jnp.float32) - y_ref.astype(jnp.float32))))

    print("KERNEL_OK")
</pallas_src>

<mosaic_0001>
module attributes {stable_mosaic.version = 11 : i64} {
  func.func @scaler_kernel(%arg0: i32, %arg1: memref<128x128xf32, #tpu.memory_space<vmem>>, %arg2: memref<1x128xf32, #tpu.memory_space<vmem>>, %arg3: memref<1x128xf32, #tpu.memory_space<vmem>>, %arg4: memref<128x128xf32, #tpu.memory_space<vmem>>) attributes {dimension_semantics = [#tpu.dimension_semantics<parallel>], iteration_bounds = array<i64: 2>, scalar_prefetch = 0 : i64, scratch_operands = 0 : i64, tpu.core_type = #tpu.core_type<tc>, window_params = [{transform_indices = @transform_0, window_bounds = array<i64: 128, 128>}, {pipeline_mode = #tpu.pipeline_mode<synchronous>, transform_indices = @transform_1, window_bounds = array<i64: 1, 128>}, {pipeline_mode = #tpu.pipeline_mode<synchronous>, transform_indices = @transform_2, window_bounds = array<i64: 1, 128>}, {transform_indices = @transform_3, window_bounds = array<i64: 128, 128>}]} {
    %c0 = arith.constant 0 : index
    %c0_0 = arith.constant 0 : index
    %0 = vector.load %arg1[%c0, %c0_0] : memref<128x128xf32, #tpu.memory_space<vmem>>, vector<128x128xf32>
    %c0_1 = arith.constant 0 : index
    %c0_2 = arith.constant 0 : index
    %1 = vector.load %arg2[%c0_1, %c0_2] : memref<1x128xf32, #tpu.memory_space<vmem>>, vector<1x128xf32>
    %2 = vector.broadcast %1 : vector<1x128xf32> to vector<128x128xf32>
    %3 = arith.subf %0, %2 : vector<128x128xf32>
    %c0_3 = arith.constant 0 : index
    %c0_4 = arith.constant 0 : index
    %4 = vector.load %arg3[%c0_3, %c0_4] : memref<1x128xf32, #tpu.memory_space<vmem>>, vector<1x128xf32>
    %5 = vector.broadcast %4 : vector<1x128xf32> to vector<128x128xf32>
    %6 = arith.divf %3, %5 : vector<128x128xf32>
    %c0_5 = arith.constant 0 : index
    %c0_6 = arith.constant 0 : index
    %7 = vector.load %arg4[%c0_5, %c0_6] : memref<128x128xf32, #tpu.memory_space<vmem>>, vector<128x128xf32>
    tpu.vector_store %arg4[%c0_5, %c0_6], %6 {strides = array<i32>} : memref<128x128xf32, #tpu.memory_space<vmem>>, vector<128x128xf32>,
    return
  }
  func.func @transform_0(%arg0: i32) -> (i32, i32) {
    %c0_i32 = arith.constant 0 : i32
    %c0_i32_0 = arith.constant 0 : i32
    return %arg0, %c0_i32 : i32, i32
  }
  func.func @transform_1(%arg0: i32) -> (i32, i32) {
    %c0_i32 = arith.constant 0 : i32
    %c0_i32_0 = arith.constant 0 : i32
    %c0_i32_1 = arith.constant 0 : i32
    return %c0_i32, %c0_i32_0 : i32, i32
  }
  func.func @transform_2(%arg0: i32) -> (i32, i32) {
    %c0_i32 = arith.constant 0 : i32
    %c0_i32_0 = arith.constant 0 : i32
    %c0_i32_1 = arith.constant 0 : i32
    return %c0_i32, %c0_i32_0 : i32, i32
  }
  func.func @transform_3(%arg0: i32) -> (i32, i32) {
    %c0_i32 = arith.constant 0 : i32
    %c0_i32_0 = arith.constant 0 : i32
    return %arg0, %c0_i32 : i32, i32
  }
}

</mosaic_0001>

<llo_original>
// kernel: scaler_forward.1
$region0: #{scaler_forward.1}
  #allocation0 [shape = 'u32[]', space=smem, size = 0x4, offset = 0x4, fixed_abs, tag = 'smem constant byte address 0x4 - core index']
  #allocation1 [shape = 'u32[144,128]{1,0:T(1,128)}', space=vmem, size = 0x12000, scoped, tag = 'internal scratch']
  %s0 = inlined_call_operand.hbm [shape: f32[256,128], index: 0, kind: input, shape index: {}]
  %s1 = inlined_call_operand.vmem [shape: f32[1,128], index: 1, kind: input, shape index: {}]
  %s2 = inlined_call_operand.vmem [shape: f32[1,128], index: 2, kind: input, shape index: {}]
  %s3 = inlined_call_operand.hbm [shape: f32[256,128], index: 3, kind: output, shape index: {}]
  %s4 = sld [smem:[#allocation0]]
  $region49: #{scaler_forward.1} parent=0
    _
  %s6 = ssub.s32 1, %s4
  %s7 = scalar_select 0, %s6, %s4
  $region1: #{scaler_forward.1} parent=0
    #allocation2 [shape = 'u8[131072]{0}', space=vmem, size = 0x20000, scoped, tag = 'input window, operand 0']
    #allocation3 [shape = 's32[2]{0}', space=sflag, size = 0x8, scoped, tag = 'scoped memory for scaler_forward.1']
    #allocation4 [shape = 's32[2]{0}', space=sflag, size = 0x8, scoped, tag = 'scoped memory for scaler_forward.1']
    #allocation5 [shape = 'u8[131072]{0}', space=vmem, size = 0x20000, scoped, tag = 'output window, operand 0']
    %8 = vsyncpa [#allocation3], 0
    %s9 = scalar_lea.sflag [#allocation3], 1
    %10 = vsyncpa %s9, 0
    %11 = vsyncpa [#allocation4], 0
    %s12 = scalar_lea.sflag [#allocation4], 1
    %13 = vsyncpa %s12, 0
    loop: start=0, step=1, limit=4
    $region2: #{scaler_forward.1} parent=1 // loop_pre_header
      _
    $region3: #{scaler_forward.1} parent=1 // loop_header
      %s15 = sphi 0, %s19
      %p16 = scmp.ge.s32.totalorder %s15, 4
      %s25 = sphi 0, %s27
      %s28 = sphi 0, %s25
      %s29 = sphi 0, %s28
      %s45 = sphi 0, %s29
      %s49 = sphi 0, %s49
      %s51 = sphi 0, %s49
      %s52 = sphi 0, %s51
      %s66 = sphi 0, %s52
      %s70 = sphi 0, %s70
      %s72 = sphi 0, %s70
      %s73 = sphi 0, %s72
      %s87 = sphi 0, %s73
      %s93 = sphi 0, %s95
      %s96 = sphi 0, %s93
      %s97 = sphi 0, %s96
      %s113 = sphi 0, %s97
    $region4: #{scaler_forward.1} parent=1 // loop_header_branch
      %18 = sbr.rel (%p16) target = $region8
    $region5: #{scaler_forward.1} parent=1 // loop_body
      %s20 = ssub.s32 %s15, 1
      %s21 = ssub.s32 %s15, 2
      %s22 = sadd.s32 %s15, 1
      %s23 = ssub.s32 %s15, %s22
      %p24 = scmp.eq.s32.totalorder %s23, 0
      %s26 = sadd.s32 %s25, 1
      %s27 = scalar_select %p24, %s25, %s26
      %p30 = pneg %p24
      %p31 = scmp.eq.s32.totalorder %s15, 1
      %p32 = por %p30, %p31
      %p33 = scmp.ne.s32.totalorder %s25, %s28
      %p34 = scmp.eq.s32.totalorder %s15, 0
      %p35 = por %p33, %p34
      %p36 = scmp.ne.s32.totalorder %s25, %s28
      %p37 = scmp.eq.s32.totalorder %s20, 1
      %p38 = por %p36, %p37
      %p39 = scmp.ne.s32.totalorder %s28, %s29
      %p40 = scmp.eq.s32.totalorder %s20, 0
      %p41 = por %p39, %p40
      %p42 = scmp.ne.s32.totalorder %s28, %s29
      %p43 = scmp.eq.s32.totalorder %s21, 1
      %p44 = por %p42, %p43
      %p46 = scmp.ne.s32.totalorder %s29, %s45
      %p47 = scmp.eq.s32.totalorder %s21, 0
      %p48 = por %p46, %p47
      %s50 = sadd.s32 %s49, 1
      %p53 = scmp.eq.s32.totalorder %s15, 1
      %p54 = scmp.ne.s32.totalorder %s49, %s51
      %p55 = scmp.eq.s32.totalorder %s15, 0
      %p56 = por %p54, %p55
      %p57 = scmp.ne.s32.totalorder %s49, %s51
      %p58 = scmp.eq.s32.totalorder %s20, 1
      %p59 = por %p57, %p58
      %p60 = scmp.ne.s32.totalorder %s51, %s52
      %p61 = scmp.eq.s32.totalorder %s20, 0
      %p62 = por %p60, %p61
      %p63 = scmp.ne.s32.totalorder %s51, %s52
      %p64 = scmp.eq.s32.totalorder %s21, 1
      %p65 = por %p63, %p64
      %p67 = scmp.ne.s32.totalorder %s52, %s66
      %p68 = scmp.eq.s32.totalorder %s21, 0
      %p69 = por %p67, %p68
      %s71 = sadd.s32 %s70, 1
      %p74 = scmp.eq.s32.totalorder %s15, 1
      %p75 = scmp.ne.s32.totalorder %s70, %s72
      %p76 = scmp.eq.s32.totalorder %s15, 0
      %p77 = por %p75, %p76
      %p78 = scmp.ne.s32.totalorder %s70, %s72
      %p79 = scmp.eq.s32.totalorder %s20, 1
      %p80 = por %p78, %p79
      %p81 = scmp.ne.s32.totalorder %s72, %s73
      %p82 = scmp.eq.s32.totalorder %s20, 0
      %p83 = por %p81, %p82
      %p84 = scmp.ne.s32.totalorder %s72, %s73
      %p85 = scmp.eq.s32.totalorder %s21, 1
      %p86 = por %p84, %p85
      %p88 = scmp.ne.s32.totalorder %s73, %s87
      %p89 = scmp.eq.s32.totalorder %s21, 0
      %p90 = por %p88, %p89
      %s91 = ssub.s32 %s15, %s22
      %p92 = scmp.eq.s32.totalorder %s91, 0
      %s94 = sadd.s32 %s93, 1
      %s95 = scalar_select %p92, %s93, %s94
      %p98 = pneg %p92
      %p99 = scmp.eq.s32.totalorder %s15, 1
      %p100 = por %p98, %p99
      %p101 = scmp.ne.s32.totalorder %s93, %s96
      %p102 = scmp.eq.s32.totalorder %s15, 0
      %p103 = por %p101, %p102
      %p104 = scmp.ne.s32.totalorder %s93, %s96
      %p105 = scmp.eq.s32.totalorder %s20, 1
      %p106 = por %p104, %p105
      %p107 = scmp.ne.s32.totalorder %s96, %s97
      %p108 = scmp.eq.s32.totalorder %s20, 0
      %p109 = por %p107, %p108
      %p110 = scmp.ne.s32.totalorder %s96, %s97
      %p111 = scmp.eq.s32.totalorder %s21, 1
      %p112 = por %p110, %p111
      %p114 = scmp.ne.s32.totalorder %s97, %s113
      %p115 = scmp.eq.s32.totalorder %s21, 0
      %p116 = por %p114, %p115
      %p117 = scmp.le.s32.totalorder 1, %s15
      %p118 = scmp.lt.s32.totalorder %s15, 3
      %p119 = pnand %p117, %p118
      %p120 = pneg %p119
      // Predicated region
      $region9: #{scaler_forward.1} parent=5 // pred_check
        _
      $region10: #{scaler_forward.1} parent=5 // pred_check_branch
        %122 = sbr.rel (%p119) target = $region12
      $region11: #{scaler_forward.1} parent=5 // pred_region
        %s123 = ssub.s32 %s15, 1
        // Predicated region
        $region13: #{scaler_forward.1} parent=11 // pred_check
          %p124 = pneg %p62
        $region14: #{scaler_forward.1} parent=11 // pred_check_branch
          %126 = sbr.rel (%p124) target = $region16
        $region15: #{scaler_forward.1} parent=11 // pred_region
          _
        $region16: #{scaler_forward.1} parent=11 // pred_fallthru
          _
        // Predicated region
        $region17: #{scaler_forward.1} parent=11 // pred_check
          %p127 = pneg %p83
        $region18: #{scaler_forward.1} parent=11 // pred_check_branch
          %129 = sbr.rel (%p127) target = $region20
        $region19: #{scaler_forward.1} parent=11 // pred_region
          _
        $region20: #{scaler_forward.1} parent=11 // pred_fallthru
          _
      $region12: #{scaler_forward.1} parent=5 // pred_fallthru
        _
      %p130 = scmp.lt.s32.totalorder %s15, 2
      // Predicated region
      $region21: #{scaler_forward.1} parent=5 // pred_check
        %p131 = pneg %p130
      $region22: #{scaler_forward.1} parent=5 // pred_check_branch
        %133 = sbr.rel (%p131) target = $region24
      $region23: #{scaler_forward.1} parent=5 // pred_region
        // Predicated region
        $region25: #{scaler_forward.1} parent=23 // pred_check
          %p134 = pneg %p35
        $region26: #{scaler_forward.1} parent=23 // pred_check_branch
          %136 = sbr.rel (%p134) target = $region28
        $region27: #{scaler_forward.1} parent=23 // pred_region
          %s137 = sand.u32 %s25, 1
          %s138 = scalar_lea.sflag [#allocation3], %s137
          %s139 = sand.u32 %s25, 1
          %s140 = smul.addr %s139, 128
          %s141 = scalar_lea.vmem [#allocation2], %s140
          %s142 = smul.u32 16, %s15
          %s144 = ssub.s32 2048, 2048
          %145 = vsyncadd %s138, %s144
          %s146 = smul.addr %s142, 128
          %s147 = scalar_lea.hbm %s0, %s146
          %s148 = sshll.u32 %s141, 4
          %s149 = int_to_ptr.vmem [resolvable:$true] %s148
          %154 = dma.hbm_to_vmem [thread:$0]  %s147, 2048, %s149, %s138, 128, 128, 8
        $region28: #{scaler_forward.1} parent=23 // pred_fallthru
          _
      $region24: #{scaler_forward.1} parent=5 // pred_fallthru
        _
      %p155 = scmp.le.s32.totalorder 1, %s15
      %p156 = scmp.lt.s32.totalorder %s15, 3
      %p157 = pnand %p155, %p156
      %p158 = pneg %p157
      // Predicated region
      $region29: #{scaler_forward.1} parent=5 // pred_check
        _
      $region30: #{scaler_forward.1} parent=5 // pred_check_branch
        %160 = sbr.rel (%p157) target = $region32
      $region31: #{scaler_forward.1} parent=5 // pred_region
        %s161 = ssub.s32 %s15, 1
        %s162 = sand.u32 %s28, 1
        %s163 = scalar_lea.sflag [#allocation3], %s162
        %s164 = sand.u32 %s28, 1
        %s165 = smul.addr %s164, 128
        %s166 = scalar_lea.vmem [#allocation2], %s165
        // Predicated region
        $region33: #{scaler_forward.1} parent=31 // pred_check
          %p167 = pneg %p41
        $region34: #{scaler_forward.1} parent=31 // pred_check_branch
          %169 = sbr.rel (%p167) target = $region36
        $region35: #{scaler_forward.1} parent=31 // pred_region
          %170 = dma.done %s163, 2048
        $region36: #{scaler_forward.1} parent=31 // pred_fallthru
          _
        %s171 = sand.u32 %s28, 1
        %s172 = scalar_lea.sflag [#allocation3], %s171
        %s173 = sand.u32 %s28, 1
        %s174 = smul.addr %s173, 128
        %s175 = scalar_lea.vmem [#allocation2], %s174
        %p176 = pneg %p41
        %p177 = pneg %p38
        %p178 = pneg %p62
        %p179 = pneg %p59
        %p180 = pneg %p83
        %p181 = pneg %p80
        %p182 = pneg %p109
        %p183 = pneg %p106
        %s184 = sand.u32 %s96, 1
        %s185 = scalar_lea.sflag [#allocation4], %s184
        %s186 = sand.u32 %s96, 1
        %s187 = smul.addr %s186, 128
        %s188 = scalar_lea.vmem [#allocation5], %s187
        %s189 = smul.u32 16, %s20
        %s190 = smul.u32 16, %s20
        %v191 = vld [vmem:[%s166] sm:$0xff]
        %v192 = vld [vmem:[%s166 + $0x8] sm:$0xff]
        %v193 = vld [vmem:[%s166 + $0x10] sm:$0xff]
        %v194 = vld [vmem:[%s166 + $0x18] sm:$0xff]
        %v195 = vld [vmem:[%s166 + $0x20] sm:$0xff]
        %v196 = vld [vmem:[%s166 + $0x28] sm:$0xff]
        %v197 = vld [vmem:[%s166 + $0x30] sm:$0xff]
        %v198 = vld [vmem:[%s166 + $0x38] sm:$0xff]
        %v199 = vld [vmem:[%s166 + $0x40] sm:$0xff]
        %v200 = vld [vmem:[%s166 + $0x48] sm:$0xff]
        %v201 = vld [vmem:[%s166 + $0x50] sm:$0xff]
        %v202 = vld [vmem:[%s166 + $0x58] sm:$0xff]
        %v203 = vld [vmem:[%s166 + $0x60] sm:$0xff]
        %v204 = vld [vmem:[%s166 + $0x68] sm:$0xff]
        %v205 = vld [vmem:[%s166 + $0x70] sm:$0xff]
        %v206 = vld [vmem:[%s166 + $0x78] sm:$0xff]
        %v207 = vld [vmem:[%s1] sm:$0x1]
        %v209 = vlaneseq
        %v210 = vshrl.u32 %v209, 7
        %v211 = vsub.s32 0, %v210
        %v212 = vrot.slane %v207, %v211
        %v214 = vsub.f32 %v191, %v212
        %v215 = vsub.f32 %v192, %v212
        %v216 = vsub.f32 %v193, %v212
        %v217 = vsub.f32 %v194, %v212
        %v218 = vsub.f32 %v195, %v212
        %v219 = vsub.f32 %v196, %v212
        %v220 = vsub.f32 %v197, %v212
        %v221 = vsub.f32 %v198, %v212
        %v222 = vsub.f32 %v199, %v212
        %v223 = vsub.f32 %v200, %v212
        %v224 = vsub.f32 %v201, %v212
        %v225 = vsub.f32 %v202, %v212
        %v226 = vsub.f32 %v203, %v212
        %v227 = vsub.f32 %v204, %v212
        %v228 = vsub.f32 %v205, %v212
        %v229 = vsub.f32 %v206, %v212
        %v230 = vld [vmem:[%s2] sm:$0x1]
        %v232 = vlaneseq
        %v233 = vshrl.u32 %v232, 7
        %v234 = vsub.s32 0, %v233
        %v235 = vrot.slane %v230, %v234
        %v237 = vrcp.pop %v235
        %v238 = vmul.f32 %v214, %v237
        %v239 = vmul.f32 %v215, %v237
        %v240 = vmul.f32 %v216, %v237
        %v241 = vmul.f32 %v217, %v237
        %v242 = vmul.f32 %v218, %v237
        %v243 = vmul.f32 %v219, %v237
        %v244 = vmul.f32 %v220, %v237
        %v245 = vmul.f32 %v221, %v237
        %v246 = vmul.f32 %v222, %v237
        %v247 = vmul.f32 %v223, %v237
        %v248 = vmul.f32 %v224, %v237
        %v249 = vmul.f32 %v225, %v237
        %v250 = vmul.f32 %v226, %v237
        %v251 = vmul.f32 %v227, %v237
        %v252 = vmul.f32 %v228, %v237
        %v253 = vmul.f32 %v229, %v237
        %254 = vst [vmem:[%s188] sm:$0xff] %v238
        %255 = vst [vmem:[%s188 + $0x8] sm:$0xff] %v239
        %256 = vst [vmem:[%s188 + $0x10] sm:$0xff] %v240
        %257 = vst [vmem:[%s188 + $0x18] sm:$0xff] %v241
        %258 = vst [vmem:[%s188 + $0x20] sm:$0xff] %v242
        %259 = vst [vmem:[%s188 + $0x28] sm:$0xff] %v243
        %260 = vst [vmem:[%s188 + $0x30] sm:$0xff] %v244
        %261 = vst [vmem:[%s188 + $0x38] sm:$0xff] %v245
        %262 = vst [vmem:[%s188 + $0x40] sm:$0xff] %v246
        %263 = vst [vmem:[%s188 + $0x48] sm:$0xff] %v247
        %264 = vst [vmem:[%s188 + $0x50] sm:$0xff] %v248
        %265 = vst [vmem:[%s188 + $0x58] sm:$0xff] %v249
        %266 = vst [vmem:[%s188 + $0x60] sm:$0xff] %v250
        %267 = vst [vmem:[%s188 + $0x68] sm:$0xff] %v251
        %268 = vst [vmem:[%s188 + $0x70] sm:$0xff] %v252
        %269 = vst [vmem:[%s188 + $0x78] sm:$0xff] %v253
        %s270 = sand.u32 %s96, 1
        %s271 = scalar_lea.sflag [#allocation4], %s270
        %s272 = sand.u32 %s96, 1
        %s273 = smul.addr %s272, 128
        %s274 = scalar_lea.vmem [#allocation5], %s273
        // Predicated region
        $region37: #{scaler_forward.1} parent=31 // pred_check
          %p275 = pneg %p106
        $region38: #{scaler_forward.1} parent=31 // pred_check_branch
          %277 = sbr.rel (%p275) target = $region40
        $region39: #{scaler_forward.1} parent=31 // pred_region
          %s278 = smul.u32 16, %s20
          %s280 = ssub.s32 2048, 2048
          %281 = vsyncadd %s271, %s280
          %s282 = smul.addr %s278, 128
          %s283 = scalar_lea.hbm %s3, %s282
          %s284 = sshll.u32 %s274, 4
          %s285 = int_to_ptr.vmem [resolvable:$true] %s284
          %290 = dma.vmem_to_hbm [thread:$0]  %s285, 2048, %s283, %s271, 128, 128, 8
        $region40: #{scaler_forward.1} parent=31 // pred_fallthru
          _
      $region32: #{scaler_forward.1} parent=5 // pred_fallthru
        _
      %p291 = scmp.le.s32.totalorder 2, %s15
      // Predicated region
      $region41: #{scaler_forward.1} parent=5 // pred_check
        %p292 = pneg %p291
      $region42: #{scaler_forward.1} parent=5 // pred_check_branch
        %294 = sbr.rel (%p292) target = $region44
      $region43: #{scaler_forward.1} parent=5 // pred_region
        %s295 = ssub.s32 %s15, 2
        // Predicated region
        $region45: #{scaler_forward.1} parent=43 // pred_check
          %p296 = pneg %p112
        $region46: #{scaler_forward.1} parent=43 // pred_check_branch
          %298 = sbr.rel (%p296) target = $region48
        $region47: #{scaler_forward.1} parent=43 // pred_region
          %s299 = sand.u32 %s97, 1
          %s300 = scalar_lea.sflag [#allocation4], %s299
          %s301 = sand.u32 %s97, 1
          %s302 = smul.addr %s301, 128
          %s303 = scalar_lea.vmem [#allocation5], %s302
          %304 = dma.done %s300, 2048
        $region48: #{scaler_forward.1} parent=43 // pred_fallthru
          _
      $region44: #{scaler_forward.1} parent=5 // pred_fallthru
        _
    $region6: #{scaler_forward.1} parent=1 // loop_footer
      %s19 = sadd.s32 1, %s15
    $region7: #{scaler_forward.1} parent=1 // loop_footer_branch
      %14 = sbr.rel target = $region3
    $region8: #{scaler_forward.1} parent=1 // loop_exit
      _
    %305 = vsyncpa [#allocation3], 1
    %s306 = scalar_lea.sflag [#allocation3], 1
    %307 = vsyncpa %s306, 1
    %308 = vsyncpa [#allocation4], 1
    %s309 = scalar_lea.sflag [#allocation4], 1
    %310 = vsyncpa %s309, 1

</llo_original>
